<compile_context>
chip_gen: v7x
topology: tpu7x:2x2x1
jax: 0.10.0
libtpu: 0.0.40
codegen_flags: <defaults>
</compile_context>

<pallas_src>
import functools
import numpy as np

import jax
import jax.numpy as jnp
from jax.experimental import pallas as pl
from jax.experimental.pallas import tpu as pltpu


# -----------------------------------------------------------------------------
# Small host-side tiling helpers
# -----------------------------------------------------------------------------
def _round_up(n, m):
    return -(-n // m) * m


def _pick_tile(n_rows, *, base=128, max_tile=512):
    """Largest multiple-of-`base` tile <= max_tile that keeps >=2 grid steps
    once there is more than one base tile of work (v7x has 2 TensorCores)."""
    if n_rows <= base:
        return base
    half = (_round_up(n_rows, base) // 2) // base * base
    return max(base, min(max_tile, half))


# -----------------------------------------------------------------------------
# Init-time dense kernel (used only for the cached label-GCN; runs once).
# -----------------------------------------------------------------------------
def _dense_kernel(x_ref, w_ref, b_ref, o_ref, *, relu_out):
    y = jnp.dot(x_ref[...], w_ref[...], preferred_element_type=jnp.float32)
    y = y + b_ref[...]
    if relu_out:
        y = jnp.maximum(y, 0.0)
    o_ref[...] = y


def dense(x, w, b=None, *, relu_out=False):
    x = jnp.asarray(x, jnp.float32)
    w = jnp.asarray(w, jnp.float32)
    M, _ = x.shape
    N = w.shape[1]
    if b is None:
        b = jnp.zeros((1, N), jnp.float32)
    else:
        b = jnp.asarray(b, jnp.float32).reshape(1, N)
    kernel = functools.partial(_dense_kernel, relu_out=relu_out)
    return pl.pallas_call(
        kernel,
        out_shape=jax.ShapeDtypeStruct((M, N), jnp.float32),
        in_specs=[pl.BlockSpec(memory_space=pltpu.MemorySpace.VMEM)] * 3,
        out_specs=pl.BlockSpec(memory_space=pltpu.MemorySpace.VMEM),
    )(x, w, b)


def label_gcn(W_param, adj_norm, wg1, wg2):
    """2-layer GCN over the class adjacency applied to the (C,H,H) weights."""
    C, H, _ = W_param.shape
    Xf = W_param.reshape(C, H * H)
    AX = dense(adj_norm, Xf)                                   # (C, H*H)
    H1 = dense(AX.reshape(C * H, H), wg1, relu_out=True)       # (C*H, H)
    AH1 = dense(adj_norm, H1.reshape(C, H * H))                # (C, H*H)
    H2 = dense(AH1.reshape(C * H, H), wg2)                     # (C*H, H)
    return H2.reshape(C, H, H)


# -----------------------------------------------------------------------------
# Fused v-tower:  relu(x @ W1 + b1) @ W2 + b2   (v_init -> relu -> lin_v)
#   Gridded over row tiles; weights resident (constant index_map); bf16 matmuls,
#   f32 epilogue.
# -----------------------------------------------------------------------------
def _vtower_kernel(x_ref, w1_ref, b1_ref, w2_ref, b2_ref, o_ref):
    h = jnp.dot(x_ref[...], w1_ref[...], preferred_element_type=jnp.float32)
    h = jnp.maximum(h + b1_ref[...], 0.0)                       # f32 epilogue
    y = jnp.dot(h.astype(jnp.bfloat16), w2_ref[...],
                preferred_element_type=jnp.float32)
    o_ref[...] = (y + b2_ref[...]).astype(o_ref.dtype)


def v_tower(x, w1, b1, w2, b2, *, tn):
    Np, F = x.shape
    H1 = w1.shape[1]
    HP = w2.shape[1]
    # TODO(synk): for very large item_feat_dim (>=512) split F into K-tiles with
    #   an f32 accumulator and re-derive VMEM headroom for v7x's 64 MiB budget.
    cost = pl.CostEstimate(
        flops=2 * Np * F * H1 + 2 * Np * H1 * HP,
        transcendentals=0,
        bytes_accessed=Np * F * 2 + F * H1 * 2 + H1 * HP * 2
        + Np * HP * 2 + (H1 + HP) * 4,
    )
    return pl.pallas_call(
        _vtower_kernel,
        out_shape=jax.ShapeDtypeStruct((Np, HP), jnp.bfloat16),
        grid=(Np // tn,),
        in_specs=[
            pl.BlockSpec((tn, F), lambda i: (i, 0)),
            pl.BlockSpec((F, H1), lambda i: (0, 0)),
            pl.BlockSpec((1, H1), lambda i: (0, 0)),
            pl.BlockSpec((H1, HP), lambda i: (0, 0)),
            pl.BlockSpec((1, HP), lambda i: (0, 0)),
        ],
        out_specs=pl.BlockSpec((tn, HP), lambda i: (i, 0)),
        compiler_params=pltpu.CompilerParams(dimension_semantics=("parallel",)),
        cost_estimate=cost,
    )(x, w1, b1, w2, b2)


# -----------------------------------------------------------------------------
# Fused bilinear scoring (per row tile):
#   for c in classes:   t_c = u @ Wc2[:, c*HP:(c+1)*HP]     (MXU)
#                       s_c = sum_k t_c * v                 (VPU + XLU reduce)
#                       score += onehot[:, c] * s_c
#   Output: lane-dense (1, TB) row per tile (single unmasked vst).
# -----------------------------------------------------------------------------
def _score_kernel(u_ref, v_ref, oh_ref, wc2_ref, o_ref, *, num_classes, hp):
    tb = u_ref.shape[0]
    score = jnp.zeros((tb, 1), jnp.float32)
    # Per-class matmul consumed immediately: live f32 is bounded to one (tb,hp)
    # block + the (tb,1) accumulator (no (tb, C*hp) t_all spill).
    for c in range(num_classes):                               # static, small C
        w_c = wc2_ref[:, c * hp:(c + 1) * hp]                  # (hp, hp) bf16
        t_c = jnp.dot(u_ref[...], w_c, preferred_element_type=jnp.float32)
        prod = t_c * v_ref[...].astype(jnp.float32)
        s_c = jnp.sum(prod, axis=-1, keepdims=True)            # (tb, 1)
        score = score + oh_ref[:, c:c + 1] * s_c
    # Lane-dense (1, tb) store instead of a (tb, 128) broadcast block:
    # cuts the score writeback by 128x and stores 1 vreg row per tile.
    o_ref[...] = jnp.transpose(score, (1, 0))


def bilinear_scores(u_h, v_h, oh, wc2, *, tb):
    Bp, HP = u_h.shape
    C = oh.shape[1]
    # TODO(synk): if num_classes grows large, sort the batch by class on the host
    #   and use PrefetchScalarGridSpec so the Wc2 index_map picks only the
    #   relevant (HP,HP) slice per tile instead of computing all C matmuls.
    kernel = functools.partial(_score_kernel, num_classes=C, hp=HP)
    cost = pl.CostEstimate(
        flops=2 * Bp * HP * HP * C + 3 * Bp * HP * C,
        transcendentals=0,
        bytes_accessed=2 * Bp * HP * 2 + HP * C * HP * 2 + Bp * C * 4 + Bp * 4,
    )
    return pl.pallas_call(
        kernel,
        out_shape=jax.ShapeDtypeStruct((1, Bp), jnp.float32),
        grid=(Bp // tb,),
        in_specs=[
            pl.BlockSpec((tb, HP), lambda i: (i, 0)),
            pl.BlockSpec((tb, HP), lambda i: (i, 0)),
            pl.BlockSpec((tb, C), lambda i: (i, 0)),
            pl.BlockSpec((HP, C * HP), lambda i: (0, 0)),
        ],
        out_specs=pl.BlockSpec((1, tb), lambda i: (0, i)),
        compiler_params=pltpu.CompilerParams(dimension_semantics=("parallel",)),
        cost_estimate=cost,
    )(u_h, v_h, oh, wc2)


# -----------------------------------------------------------------------------
# Module wrapper with deterministic parameter init
# -----------------------------------------------------------------------------
class MLPDiscriminatorPallas:
    HIDDEN = 60
    HP = 128          # lane-padded hidden width

    def __init__(self, num_users, num_items, item_feat_dim, num_classes, key):
        H, HP = self.HIDDEN, self.HP
        self.num_users = num_users
        self.num_classes = num_classes

        ks = jax.random.split(key, 10)
        r = lambda k, shp, s=0.05: jax.random.normal(k, shp, jnp.float32) * s

        item_emb = r(ks[0], (num_items, item_feat_dim), 1.0)
        W_vinit = r(ks[1], (item_feat_dim, 128))
        b_vinit = r(ks[2], (128,))
        W_linv = r(ks[3], (128, H))
        b_linv = r(ks[4], (H,))
        W_linu = r(ks[5], (num_users, H))
        b_linu = r(ks[6], (H,))
        W_bil = jax.random.uniform(ks[7], (num_classes, H, H), jnp.float32)
        Wg1 = r(ks[8], (H, H))
        Wg2 = r(ks[9], (H, H))

        # symmetric-normalized label adjacency  D^-1/2 (A + I) D^-1/2
        a = np.ones((num_classes, num_classes), np.float32)
        a = a + np.eye(num_classes, dtype=np.float32)
        d = 1.0 / np.sqrt(a.sum(1))
        adj = jnp.asarray(d[:, None] * a * d[None, :], jnp.float32)

        # --- cached precomputations -------------------------------------------
        # u_hidden = lin_u(eye(U)) == W_linu + b_linu   (eye matmul eliminated)
        u_hid = jnp.zeros((num_users, HP), jnp.float32).at[:, :H].set(
            W_linu + b_linu[None, :])
        self.u_hidden = u_hid.astype(jnp.bfloat16)               # (U, HP)

        # label GCN depends only on parameters/adj -> compute once, cache as
        # lane-padded (HP, C*HP) bf16 for the per-class scoring matmuls.
        Wc = label_gcn(W_bil, adj, Wg1, Wg2)                      # (C, H, H)
        Wc_pad = jnp.zeros((num_classes, HP, HP), jnp.float32).at[:, :H, :H].set(Wc)
        self.Wc2 = jnp.transpose(Wc_pad, (1, 0, 2)).reshape(
            HP, num_classes * HP).astype(jnp.bfloat16)            # (HP, C*HP)
        # TODO(synk): on v7x only, W1/W2/Wc2 could be stored as fp8 (e4m3) with
        #   f32 accumulation if the v-tower ever becomes compute-bound.

        # v-tower parameters: bf16 matmul operands, f32 biases, lane-padded out.
        self.item_emb = item_emb.astype(jnp.bfloat16)             # (I, F)
        self.W1 = W_vinit.astype(jnp.bfloat16)                    # (F, 128)
        self.b1 = b_vinit.reshape(1, 128).astype(jnp.float32)
        W2 = jnp.zeros((128, HP), jnp.float32).at[:, :H].set(W_linv)
        self.W2 = W2.astype(jnp.bfloat16)                         # (128, HP)
        self.b2 = jnp.zeros((1, HP), jnp.float32).at[0, :H].set(b_linv)

        self._forward_jit = jax.jit(self._device_forward)

    # ---- device-side forward (jit-ed: gathers + pallas calls fuse/schedule) --
    def _device_forward(self, u_idx, v_uni, v_pos, type_ids):
        # v tower over unique items (rows padded to a full tile multiple)
        n_uni = v_uni.shape[0]
        tn = _pick_tile(n_uni, max_tile=512)
        n_pad = _round_up(n_uni, tn)
        v_uni_p = jnp.pad(v_uni, (0, n_pad - n_uni))
        x_items = self.item_emb[v_uni_p]                          # (n_pad, F)
        v_hidden = v_tower(x_items, self.W1, self.b1, self.W2, self.b2, tn=tn)

        # Pad the cheap int32 index vectors, then gather at padded length
        # (avoids materializing padded copies of the gathered (B,128) arrays).
        B = u_idx.shape[0]
        tb = _pick_tile(B, max_tile=256)
        b_pad = _round_up(B, tb)
        pad = (0, b_pad - B)
        u_idx_p = jnp.pad(u_idx, pad)
        v_pos_p = jnp.pad(v_pos, pad)
        type_p = jnp.pad(type_ids, pad)

        u_h = self.u_hidden[u_idx_p]                              # (b_pad, HP) bf16
        v_h = v_hidden[v_pos_p]                                   # (b_pad, HP) bf16
        oh = jax.nn.one_hot(type_p, self.num_classes, dtype=jnp.float32)

        scores = bilinear_scores(u_h, v_h, oh, self.Wc2, tb=tb)   # (1, b_pad) f32
        return scores[0, :B].reshape(B, 1)                        # (B, 1) f32

    def forward(self, u_idx, v_idx, type_ids):
        u_idx = np.asarray(u_idx)
        v_idx = np.asarray(v_idx)
        type_ids = np.asarray(type_ids)
        # TODO(synk): host-side unique+remap mirrors the .cpu().numpy() glue in
        #   the PyTorch reference; shapes vary with the unique count so each
        #   distinct count triggers one jit specialization.
        v_uni, v_pos = np.unique(v_idx, return_inverse=True)
        return self._forward_jit(jnp.asarray(u_idx, jnp.int32),
                                 jnp.asarray(v_uni, jnp.int32),
                                 jnp.asarray(v_pos, jnp.int32),
                                 jnp.asarray(type_ids, jnp.int32))


# -----------------------------------------------------------------------------
if __name__ == "__main__":
    key = jax.random.PRNGKey(0)
    num_users, num_items, item_feat, num_classes = 8, 10, 32, 4
    batch = 8

    model = MLPDiscriminatorPallas(num_users, num_items, item_feat, num_classes, key)

    k1, k2, k3 = jax.random.split(jax.random.PRNGKey(0), 3)
    u_idx = jax.random.randint(k1, (batch,), 0, num_users, jnp.int32)
    v_idx = jax.random.randint(k2, (batch,), 0, num_items, jnp.int32)
    type_ids = jax.random.randint(k3, (batch,), 0, num_classes, jnp.int32)

    validity = model.forward(u_idx, v_idx, type_ids)
    jax.block_until_ready(validity)
    assert validity.shape == (batch, 1) and validity.dtype == jnp.float32
    assert bool(jnp.all(jnp.isfinite(validity)))
    print("KERNEL_OK")
</pallas_src>

<mosaic_0001>
module attributes {stable_mosaic.version = 11 : i64} {
  func.func @_dense_kernel(%arg0: memref<4x4xf32, #tpu.memory_space<vmem>>, %arg1: memref<4x3600xf32, #tpu.memory_space<vmem>>, %arg2: memref<1x3600xf32, #tpu.memory_space<vmem>>, %arg3: memref<4x3600xf32, #tpu.memory_space<vmem>>) attributes {dimension_semantics = [], scalar_prefetch = 0 : i64, scratch_operands = 0 : i64, tpu.core_type = #tpu.core_type<tc>} {
    %c0 = arith.constant 0 : index
    %c0_0 = arith.constant 0 : index
    %0 = vector.load %arg0[%c0, %c0_0] : memref<4x4xf32, #tpu.memory_space<vmem>>, vector<4x4xf32>
    %c0_1 = arith.constant 0 : index
    %c0_2 = arith.constant 0 : index
    %1 = vector.load %arg1[%c0_1, %c0_2] : memref<4x3600xf32, #tpu.memory_space<vmem>>, vector<4x3600xf32>
    %cst = arith.constant dense<0.000000e+00> : vector<4x3600xf32>
    %2 = tpu.matmul %0, %1, %cst {dimension_numbers = #tpu.dot_dimension_numbers<[1], [0], [0], [1], [0, 0, 1, 1], [], []>} : vector<4x4xf32>, vector<4x3600xf32>, vector<4x3600xf32> -> vector<4x3600xf32>
    %c0_3 = arith.constant 0 : index
    %c0_4 = arith.constant 0 : index
    %3 = vector.load %arg2[%c0_3, %c0_4] : memref<1x3600xf32, #tpu.memory_space<vmem>>, vector<1x3600xf32>
    %4 = vector.broadcast %3 : vector<1x3600xf32> to vector<4x3600xf32>
    %5 = arith.addf %2, %4 : vector<4x3600xf32>
    %c0_5 = arith.constant 0 : index
    %c0_6 = arith.constant 0 : index
    %6 = vector.load %arg3[%c0_5, %c0_6] : memref<4x3600xf32, #tpu.memory_space<vmem>>, vector<4x3600xf32>
    tpu.vector_store %arg3[%c0_5, %c0_6], %5 {strides = array<i32>} : memref<4x3600xf32, #tpu.memory_space<vmem>>, vector<4x3600xf32>,
    return
  }
}

</mosaic_0001>

<llo_original>
// kernel: tpu_custom_call.1
$region0: #{tpu_custom_call.1}
  #allocation0 [shape = 'u32[]', space=smem, size = 0x4, offset = 0x4, fixed_abs, tag = 'smem constant byte address 0x4 - core index']
  #allocation1 [shape = 'u32[144,128]{1,0:T(1,128)}', space=vmem, size = 0x12000, scoped, tag = 'internal scratch']
  %s0 = inlined_call_operand.hbm [shape: f32[4,4], index: 0, kind: input, shape index: {}]
  %s1 = inlined_call_operand.hbm [shape: f32[4,3600], index: 1, kind: input, shape index: {}]
  %s2 = inlined_call_operand.hbm [shape: f32[1,3600], index: 2, kind: input, shape index: {}]
  %s3 = inlined_call_operand.hbm [shape: f32[4,3600], index: 3, kind: output, shape index: {}]
  %s4 = sld [smem:[#allocation0]]
  $region34: #{tpu_custom_call.1} parent=0
    _
  %s6 = ssub.s32 1, %s4
  %s7 = scalar_select 0, %s6, %s4
  $region1: #{tpu_custom_call.1} parent=0
    #allocation2 [shape = 'u8[2048]{0}', space=vmem, size = 0x800, scoped, tag = 'input window, operand 0, single buffered']
    #allocation3 [shape = 's32[1]{0}', space=sflag, size = 0x4, scoped, tag = 'scoped memory for tpu_custom_call.1']
    #allocation4 [shape = 's32[1]{0}', space=sflag, size = 0x4, scoped, tag = 'scoped memory for tpu_custom_call.1']
    #allocation5 [shape = 'u8[59392]{0}', space=vmem, size = 0xe800, scoped, tag = 'input window, operand 1, single buffered']
    #allocation6 [shape = 's32[1]{0}', space=sflag, size = 0x4, scoped, tag = 'scoped memory for tpu_custom_call.1']
    #allocation7 [shape = 'u8[14848]{0}', space=vmem, size = 0x3c00, scoped, tag = 'input window, operand 2, single buffered']
    #allocation8 [shape = 'u8[59392]{0}', space=vmem, size = 0xe800, scoped, tag = 'output window, operand 0, single buffered']
    %8 = vsyncpa [#allocation3], 0
    %9 = vsyncpa [#allocation6], 0
    %10 = vsyncpa [#allocation4], 0
    // Predicated region
    $region2: #{tpu_custom_call.1} parent=1 // pred_check
      _
    $region3: #{tpu_custom_call.1} parent=1 // pred_check_branch
      %12 = sbr.rel (0) target = $region5
    $region4: #{tpu_custom_call.1} parent=1 // pred_region
      %s14 = ssub.s32 64, 64
      %15 = vsyncadd [#allocation3], %s14
      %s17 = sshll.u32 [#allocation2], 4
      %s18 = int_to_ptr.vmem [resolvable:$true] %s17
      %20 = dma.hbm_to_vmem [thread:$0]  %s0, 64, %s18, [#allocation3]
    $region5: #{tpu_custom_call.1} parent=1 // pred_fallthru
      _
    // Predicated region
    $region6: #{tpu_custom_call.1} parent=1 // pred_check
      _
    $region7: #{tpu_custom_call.1} parent=1 // pred_check_branch
      %22 = sbr.rel (0) target = $region9
    $region8: #{tpu_custom_call.1} parent=1 // pred_region
      %s24 = ssub.s32 1856, 1856
      %25 = vsyncadd [#allocation6], %s24
      %s27 = sshll.u32 [#allocation5], 4
      %s28 = int_to_ptr.vmem [resolvable:$true] %s27
      %30 = dma.hbm_to_vmem [thread:$0]  %s1, 1856, %s28, [#allocation6]
    $region9: #{tpu_custom_call.1} parent=1 // pred_fallthru
      _
    // Predicated region
    $region10: #{tpu_custom_call.1} parent=1 // pred_check
      _
    $region11: #{tpu_custom_call.1} parent=1 // pred_check_branch
      %32 = sbr.rel (0) target = $region13
    $region12: #{tpu_custom_call.1} parent=1 // pred_region
      %s34 = ssub.s32 464, 464
      %35 = vsyncadd [#allocation6], %s34
      %s37 = sshll.u32 [#allocation7], 4
      %s38 = int_to_ptr.vmem [resolvable:$true] %s37
      %40 = dma.hbm_to_vmem [thread:$0]  %s2, 464, %s38, [#allocation6]
    $region13: #{tpu_custom_call.1} parent=1 // pred_fallthru
      _
    // Predicated region
    $region14: #{tpu_custom_call.1} parent=1 // pred_check
      _
    $region15: #{tpu_custom_call.1} parent=1 // pred_check_branch
      %42 = sbr.rel (0) target = $region17
    $region16: #{tpu_custom_call.1} parent=1 // pred_region
      %43 = dma.done [#allocation3], 64
    $region17: #{tpu_custom_call.1} parent=1 // pred_fallthru
      _
    // Predicated region
    $region18: #{tpu_custom_call.1} parent=1 // pred_check
      _
    $region19: #{tpu_custom_call.1} parent=1 // pred_check_branch
      %45 = sbr.rel (0) target = $region21
    $region20: #{tpu_custom_call.1} parent=1 // pred_region
      %46 = dma.done [#allocation6], 1856
    $region21: #{tpu_custom_call.1} parent=1 // pred_fallthru
      _
    // Predicated region
    $region22: #{tpu_custom_call.1} parent=1 // pred_check
      _
    $region23: #{tpu_custom_call.1} parent=1 // pred_check_branch
      %48 = sbr.rel (0) target = $region25
    $region24: #{tpu_custom_call.1} parent=1 // pred_region
      %49 = dma.done [#allocation6], 464
    $region25: #{tpu_custom_call.1} parent=1 // pred_fallthru
      _
    %v50 = vld [vmem:[#allocation2] sm:$0xf]
    %v51 = vld [vmem:[#allocation5] sm:$0xff]
    %v52 = vld [vmem:[#allocation5 + $0x8] sm:$0xff]
    %v53 = vld [vmem:[#allocation5 + $0x10] sm:$0xff]
    %v54 = vld [vmem:[#allocation5 + $0x18] sm:$0xff]
    %v55 = vld [vmem:[#allocation5 + $0x20] sm:$0xff]
    %v56 = vld [vmem:[#allocation5 + $0x28] sm:$0xff]
    %v57 = vld [vmem:[#allocation5 + $0x30] sm:$0xff]
    %v58 = vld [vmem:[#allocation5 + $0x38] sm:$0xff]
    %v59 = vld [vmem:[#allocation5 + $0x40] sm:$0xff]
    %v60 = vld [vmem:[#allocation5 + $0x48] sm:$0xff]
    %v61 = vld [vmem:[#allocation5 + $0x50] sm:$0xff]
    %v62 = vld [vmem:[#allocation5 + $0x58] sm:$0xff]
    %v63 = vld [vmem:[#allocation5 + $0x60] sm:$0xff]
    %v64 = vld [vmem:[#allocation5 + $0x68] sm:$0xff]
    %v65 = vld [vmem:[#allocation5 + $0x70] sm:$0xf]
    %v66 = vld [vmem:[#allocation7] sm:$0xff]
    %v67 = vld [vmem:[#allocation7 + $0x8] sm:$0xff]
    %v68 = vld [vmem:[#allocation7 + $0x10] sm:$0xff]
    %v69 = vld [vmem:[#allocation7 + $0x18] sm:$0x1f]
    %v74 = vlaneseq
    %v75 = vshrl.u32 %v74, 7
    %v76 = vsub.s32 0, %v75
    %v77 = vrot.slane %v66, %v76
    %v78 = vlaneseq
    %v79 = vshrl.u32 %v78, 7
    %v80 = vsub.s32 1, %v79
    %v81 = vrot.slane %v66, %v80
    %v82 = vlaneseq
    %v83 = vshrl.u32 %v82, 7
    %v84 = vsub.s32 2, %v83
    %v85 = vrot.slane %v66, %v84
    %v86 = vlaneseq
    %v87 = vshrl.u32 %v86, 7
    %v88 = vsub.s32 3, %v87
    %v89 = vrot.slane %v66, %v88
    %v90 = vlaneseq
    %v91 = vshrl.u32 %v90, 7
    %v92 = vsub.s32 4, %v91
    %v93 = vrot.slane %v66, %v92
    %v94 = vlaneseq
    %v95 = vshrl.u32 %v94, 7
    %v96 = vsub.s32 5, %v95
    %v97 = vrot.slane %v66, %v96
    %v98 = vlaneseq
    %v99 = vshrl.u32 %v98, 7
    %v100 = vsub.s32 6, %v99
    %v101 = vrot.slane %v66, %v100
    %v102 = vlaneseq
    %v103 = vshrl.u32 %v102, 7
    %v104 = vsub.s32 7, %v103
    %v105 = vrot.slane %v66, %v104
    %v106 = vlaneseq
    %v107 = vshrl.u32 %v106, 7
    %v108 = vsub.s32 0, %v107
    %v109 = vrot.slane %v67, %v108
    %v110 = vlaneseq
    %v111 = vshrl.u32 %v110, 7
    %v112 = vsub.s32 1, %v111
    %v113 = vrot.slane %v67, %v112
    %v114 = vlaneseq
    %v115 = vshrl.u32 %v114, 7
    %v116 = vsub.s32 2, %v115
    %v117 = vrot.slane %v67, %v116
    %v118 = vlaneseq
    %v119 = vshrl.u32 %v118, 7
    %v120 = vsub.s32 3, %v119
    %v121 = vrot.slane %v67, %v120
    %v122 = vlaneseq
    %v123 = vshrl.u32 %v122, 7
    %v124 = vsub.s32 4, %v123
    %v125 = vrot.slane %v67, %v124
    %v126 = vlaneseq
    %v127 = vshrl.u32 %v126, 7
    %v128 = vsub.s32 5, %v127
    %v129 = vrot.slane %v67, %v128
    %v130 = vlaneseq
    %v131 = vshrl.u32 %v130, 7
    %v132 = vsub.s32 6, %v131
    %v133 = vrot.slane %v67, %v132
    %v134 = vlaneseq
    %v135 = vshrl.u32 %v134, 7
    %v136 = vsub.s32 7, %v135
    %v137 = vrot.slane %v67, %v136
    %v138 = vlaneseq
    %v139 = vshrl.u32 %v138, 7
    %v140 = vsub.s32 0, %v139
    %v141 = vrot.slane %v68, %v140
    %v142 = vlaneseq
    %v143 = vshrl.u32 %v142, 7
    %v144 = vsub.s32 1, %v143
    %v145 = vrot.slane %v68, %v144
    %v146 = vlaneseq
    %v147 = vshrl.u32 %v146, 7
    %v148 = vsub.s32 2, %v147
    %v149 = vrot.slane %v68, %v148
    %v150 = vlaneseq
    %v151 = vshrl.u32 %v150, 7
    %v152 = vsub.s32 3, %v151
    %v153 = vrot.slane %v68, %v152
    %v154 = vlaneseq
    %v155 = vshrl.u32 %v154, 7
    %v156 = vsub.s32 4, %v155
    %v157 = vrot.slane %v68, %v156
    %v158 = vlaneseq
    %v159 = vshrl.u32 %v158, 7
    %v160 = vsub.s32 5, %v159
    %v161 = vrot.slane %v68, %v160
    %v162 = vlaneseq
    %v163 = vshrl.u32 %v162, 7
    %v164 = vsub.s32 6, %v163
    %v165 = vrot.slane %v68, %v164
    %v166 = vlaneseq
    %v167 = vshrl.u32 %v166, 7
    %v168 = vsub.s32 7, %v167
    %v169 = vrot.slane %v68, %v168
    %v170 = vlaneseq
    %v171 = vshrl.u32 %v170, 7
    %v172 = vsub.s32 0, %v171
    %v173 = vrot.slane %v69, %v172
    %v174 = vlaneseq
    %v175 = vshrl.u32 %v174, 7
    %v176 = vsub.s32 1, %v175
    %v177 = vrot.slane %v69, %v176
    %v178 = vlaneseq
    %v179 = vshrl.u32 %v178, 7
    %v180 = vsub.s32 2, %v179
    %v181 = vrot.slane %v69, %v180
    %v182 = vlaneseq
    %v183 = vshrl.u32 %v182, 7
    %v184 = vsub.s32 3, %v183
    %v185 = vrot.slane %v69, %v184
    %v186 = vlaneseq
    %v187 = vshrl.u32 %v186, 7
    %v188 = vsub.s32 4, %v187
    %v189 = vrot.slane %v69, %v188
    %v234 = vcombine.high %v51, %v51
    %v235 = vcombine.high %v52, %v52
    %v236 = vcombine.high %v53, %v53
    %v237 = vcombine.high %v54, %v54
    %v238 = vcombine.high %v55, %v55
    %v239 = vcombine.high %v56, %v56
    %v240 = vcombine.high %v57, %v57
    %v241 = vcombine.high %v58, %v58
    %v242 = vcombine.high %v59, %v59
    %v243 = vcombine.high %v60, %v60
    %v244 = vcombine.high %v61, %v61
    %v245 = vcombine.high %v62, %v62
    %v246 = vcombine.high %v63, %v63
    %v247 = vcombine.high %v64, %v64
    %vm248 = vcmask 31744
    %v250 = vsel %vm248, %v50, 0
    %vm252 = vcmask 1043456
    %v253 = vsel %vm252, %v51, 0
    %v255 = vsel %vm252, %v234, 0
    %v257 = vsel %vm252, %v52, 0
    %v259 = vsel %vm252, %v235, 0
    %v261 = vsel %vm252, %v53, 0
    %v263 = vsel %vm252, %v236, 0
    %v265 = vsel %vm252, %v54, 0
    %v267 = vsel %vm252, %v237, 0
    %v269 = vsel %vm252, %v55, 0
    %v271 = vsel %vm252, %v238, 0
    %v273 = vsel %vm252, %v56, 0
    %v275 = vsel %vm252, %v239, 0
    %v277 = vsel %vm252, %v57, 0
    %v279 = vsel %vm252, %v240, 0
    %v281 = vsel %vm252, %v58, 0
    %v283 = vsel %vm252, %v241, 0
    %v285 = vsel %vm252, %v59, 0
    %v287 = vsel %vm252, %v242, 0
    %v289 = vsel %vm252, %v60, 0
    %v291 = vsel %vm252, %v243, 0
    %v293 = vsel %vm252, %v61, 0
    %v295 = vsel %vm252, %v244, 0
    %v297 = vsel %vm252, %v62, 0
    %v299 = vsel %vm252, %v245, 0
    %v301 = vsel %vm252, %v63, 0
    %v303 = vsel %vm252, %v246, 0
    %v305 = vsel %vm252, %v64, 0
    %v307 = vsel %vm252, %v247, 0
    %v309 = vsel %vm252, %v65, 0
    %311 = vmatprep.subr.mxu0 %v255
    %312 = vmatpush1.msra.mxu0 %v253
    %313 = vmatprep.subr.mxu0 0.0
    %314 = vmatpush1.msra.mxu0 0.0
    %315 = vmatprep.subr.mxu0 0.0
    %316 = vmatpush1.msra.mxu0 0.0
    %317 = vmatprep.subr.mxu0 0.0
    %318 = vmatpush1.msra.mxu0 0.0
    %319 = vmatprep.subr.mxu0 0.0
    %320 = vmatpush1.msra.mxu0 0.0
    %321 = vmatprep.subr.mxu0 0.0
    %322 = vmatpush1.msra.mxu0 0.0
    %323 = vmatprep.subr.mxu0 0.0
    %324 = vmatpush1.msra.mxu0 0.0
    %325 = vmatprep.subr.mxu0 0.0
    %326 = vmatpush1.msra.mxu0 0.0
    %327 = vmatprep.subr.mxu0 0.0
    %328 = vmatpush1.msra.mxu0 0.0
    %329 = vmatprep.subr.mxu0 0.0
    %330 = vmatpush1.msra.mxu0 0.0
    %331 = vmatprep.subr.mxu0 0.0
    %332 = vmatpush1.msra.mxu0 0.0
    %333 = vmatprep.subr.mxu0 0.0
    %334 = vmatpush1.msra.mxu0 0.0
    %335 = vmatprep.subr.mxu0 0.0
    %336 = vmatpush1.msra.mxu0 0.0
    %337 = vmatprep.subr.mxu0 0.0
    %338 = vmatpush1.msra.mxu0 0.0
    %339 = vmatprep.subr.mxu0 0.0
    %340 = vmatpush1.msra.mxu0 0.0
    %341 = vmatprep.subr.mxu0 0.0
    %342 = vmatpush1.msra.mxu0 0.0
    %343 = vmatprep.subr.mxu0 0.0
    %344 = vmatpush1.msra.mxu0 0.0
    %345 = vmatprep.subr.mxu0 0.0
    %346 = vmatpush1.msra.mxu0 0.0
    %347 = vmatprep.subr.mxu0 0.0
    %348 = vmatpush1.msra.mxu0 0.0
    %349 = vmatprep.subr.mxu0 0.0
    %350 = vmatpush1.msra.mxu0 0.0
    %351 = vmatprep.subr.mxu0 0.0
    %352 = vmatpush1.msra.mxu0 0.0
    %353 = vmatprep.subr.mxu0 0.0
    %354 = vmatpush1.msra.mxu0 0.0
    %355 = vmatprep.subr.mxu0 0.0
    %356 = vmatpush1.msra.mxu0 0.0
    %357 = vmatprep.subr.mxu0 0.0
    %358 = vmatpush1.msra.mxu0 0.0
    %359 = vmatprep.subr.mxu0 0.0
    %360 = vmatpush1.msra.mxu0 0.0
    %361 = vmatprep.subr.mxu0 0.0
    %362 = vmatpush1.msra.mxu0 0.0
    %363 = vmatprep.subr.mxu0 0.0
    %364 = vmatpush1.msra.mxu0 0.0
    %365 = vmatprep.subr.mxu0 0.0
    %366 = vmatpush1.msra.mxu0 0.0
    %367 = vmatprep.subr.mxu0 0.0
    %368 = vmatpush1.msra.mxu0 0.0
    %369 = vmatprep.subr.mxu0 0.0
    %370 = vmatpush1.msra.mxu0 0.0
    %371 = vmatprep.subr.mxu0 0.0
    %372 = vmatpush1.msra.mxu0 0.0
    %373 = vmatprep.subr.mxu0 0.0
    %374 = vmatpush1.msra.mxu0 0.0
    %375 = vmatprep.mubr.f32.mxu0 0.0
    %376 = vmatmul.mubr.f32.gmra.mrb[0].mxu0 %v250
    %v377 = vpop.f32.mrb[0].mxu0
    %v378 = vadd.f32 %v77, %v377
    %v379 = vpop.f32.mrb[0].mxu0
    %v380 = vadd.f32 %v81, %v379
    %381 = vdwg.mxu0
    %382 = vmatprep.subr.mxu0 %v259
    %383 = vmatpush1.msra.mxu0 %v257
    %384 = vmatprep.subr.mxu0 0.0
    %385 = vmatpush1.msra.mxu0 0.0
    %386 = vmatprep.subr.mxu0 0.0
    %387 = vmatpush1.msra.mxu0 0.0
    %388 = vmatprep.subr.mxu0 0.0
    %389 = vmatpush1.msra.mxu0 0.0
    %390 = vmatprep.subr.mxu0 0.0
    %391 = vmatpush1.msra.mxu0 0.0
    %392 = vmatprep.subr.mxu0 0.0
    %393 = vmatpush1.msra.mxu0 0.0
    %394 = vmatprep.subr.mxu0 0.0
    %395 = vmatpush1.msra.mxu0 0.0
    %396 = vmatprep.subr.mxu0 0.0
    %397 = vmatpush1.msra.mxu0 0.0
    %398 = vmatprep.subr.mxu0 0.0
    %399 = vmatpush1.msra.mxu0 0.0
    %400 = vmatprep.subr.mxu0 0.0
    %401 = vmatpush1.msra.mxu0 0.0
    %402 = vmatprep.subr.mxu0 0.0
    %403 = vmatpush1.msra.mxu0 0.0
    %404 = vmatprep.subr.mxu0 0.0
    %405 = vmatpush1.msra.mxu0 0.0
    %406 = vmatprep.subr.mxu0 0.0
    %407 = vmatpush1.msra.mxu0 0.0
    %408 = vmatprep.subr.mxu0 0.0
    %409 = vmatpush1.msra.mxu0 0.0
    %410 = vmatprep.subr.mxu0 0.0
    %411 = vmatpush1.msra.mxu0 0.0
    %412 = vmatprep.subr.mxu0 0.0
    %413 = vmatpush1.msra.mxu0 0.0
    %414 = vmatprep.subr.mxu0 0.0
    %415 = vmatpush1.msra.mxu0 0.0
    %416 = vmatprep.subr.mxu0 0.0
    %417 = vmatpush1.msra.mxu0 0.0
    %418 = vmatprep.subr.mxu0 0.0
    %419 = vmatpush1.msra.mxu0 0.0
    %420 = vmatprep.subr.mxu0 0.0
    %421 = vmatpush1.msra.mxu0 0.0
    %422 = vmatprep.subr.mxu0 0.0
    %423 = vmatpush1.msra.mxu0 0.0
    %424 = vmatprep.subr.mxu0 0.0
    %425 = vmatpush1.msra.mxu0 0.0
    %426 = vmatprep.subr.mxu0 0.0
    %427 = vmatpush1.msra.mxu0 0.0
    %428 = vmatprep.subr.mxu0 0.0
    %429 = vmatpush1.msra.mxu0 0.0
    %430 = vmatprep.subr.mxu0 0.0
    %431 = vmatpush1.msra.mxu0 0.0
    %432 = vmatprep.subr.mxu0 0.0
    %433 = vmatpush1.msra.mxu0 0.0
    %434 = vmatprep.subr.mxu0 0.0
    %435 = vmatpush1.msra.mxu0 0.0
    %436 = vmatprep.subr.mxu0 0.0
    %437 = vmatpush1.msra.mxu0 0.0
    %438 = vmatprep.subr.mxu0 0.0
    %439 = vmatpush1.msra.mxu0 0.0
    %440 = vmatprep.subr.mxu0 0.0
    %441 = vmatpush1.msra.mxu0 0.0
    %442 = vmatprep.subr.mxu0 0.0
    %443 = vmatpush1.msra.mxu0 0.0
    %444 = vmatprep.subr.mxu0 0.0
    %445 = vmatpush1.msra.mxu0 0.0
    %446 = vmatprep.mubr.f32.mxu0 0.0
    %447 = vmatmul.mubr.f32.gmra.mrb[0].mxu0 %v250
    %v448 = vpop.f32.mrb[0].mxu0
    %v449 = vadd.f32 %v85, %v448
    %v450 = vpop.f32.mrb[0].mxu0
    %v451 = vadd.f32 %v89, %v450
    %452 = vdwg.mxu0
    %453 = vmatprep.subr.mxu0 %v263
    %454 = vmatpush1.msra.mxu0 %v261
    %455 = vmatprep.subr.mxu0 0.0
    %456 = vmatpush1.msra.mxu0 0.0
    %457 = vmatprep.subr.mxu0 0.0
    %458 = vmatpush1.msra.mxu0 0.0
    %459 = vmatprep.subr.mxu0 0.0
    %460 = vmatpush1.msra.mxu0 0.0
    %461 = vmatprep.subr.mxu0 0.0
    %462 = vmatpush1.msra.mxu0 0.0
    %463 = vmatprep.subr.mxu0 0.0
    %464 = vmatpush1.msra.mxu0 0.0
    %465 = vmatprep.subr.mxu0 0.0
    %466 = vmatpush1.msra.mxu0 0.0
    %467 = vmatprep.subr.mxu0 0.0
    %468 = vmatpush1.msra.mxu0 0.0
    %469 = vmatprep.subr.mxu0 0.0
    %470 = vmatpush1.msra.mxu0 0.0
    %471 = vmatprep.subr.mxu0 0.0
    %472 = vmatpush1.msra.mxu0 0.0
    %473 = vmatprep.subr.mxu0 0.0
    %474 = vmatpush1.msra.mxu0 0.0
    %475 = vmatprep.subr.mxu0 0.0
    %476 = vmatpush1.msra.mxu0 0.0
    %477 = vmatprep.subr.mxu0 0.0
    %478 = vmatpush1.msra.mxu0 0.0
    %479 = vmatprep.subr.mxu0 0.0
    %480 = vmatpush1.msra.mxu0 0.0
    %481 = vmatprep.subr.mxu0 0.0
    %482 = vmatpush1.msra.mxu0 0.0
    %483 = vmatprep.subr.mxu0 0.0
    %484 = vmatpush1.msra.mxu0 0.0
    %485 = vmatprep.subr.mxu0 0.0
    %486 = vmatpush1.msra.mxu0 0.0
    %487 = vmatprep.subr.mxu0 0.0
    %488 = vmatpush1.msra.mxu0 0.0
    %489 = vmatprep.subr.mxu0 0.0
    %490 = vmatpush1.msra.mxu0 0.0
    %491 = vmatprep.subr.mxu0 0.0
    %492 = vmatpush1.msra.mxu0 0.0
    %493 = vmatprep.subr.mxu0 0.0
    %494 = vmatpush1.msra.mxu0 0.0
    %495 = vmatprep.subr.mxu0 0.0
    %496 = vmatpush1.msra.mxu0 0.0
    %497 = vmatprep.subr.mxu0 0.0
    %498 = vmatpush1.msra.mxu0 0.0
    %499 = vmatprep.subr.mxu0 0.0
    %500 = vmatpush1.msra.mxu0 0.0
    %501 = vmatprep.subr.mxu0 0.0
    %502 = vmatpush1.msra.mxu0 0.0
    %503 = vmatprep.subr.mxu0 0.0
    %504 = vmatpush1.msra.mxu0 0.0
    %505 = vmatprep.subr.mxu0 0.0
    %506 = vmatpush1.msra.mxu0 0.0
    %507 = vmatprep.subr.mxu0 0.0
    %508 = vmatpush1.msra.mxu0 0.0
    %509 = vmatprep.subr.mxu0 0.0
    %510 = vmatpush1.msra.mxu0 0.0
    %511 = vmatprep.subr.mxu0 0.0
    %512 = vmatpush1.msra.mxu0 0.0
    %513 = vmatprep.subr.mxu0 0.0
    %514 = vmatpush1.msra.mxu0 0.0
    %515 = vmatprep.subr.mxu0 0.0
    %516 = vmatpush1.msra.mxu0 0.0
    %517 = vmatprep.mubr.f32.mxu0 0.0
    %518 = vmatmul.mubr.f32.gmra.mrb[0].mxu0 %v250
    %v519 = vpop.f32.mrb[0].mxu0
    %v520 = vadd.f32 %v93, %v519
    %v521 = vpop.f32.mrb[0].mxu0
    %v522 = vadd.f32 %v97, %v521
    %523 = vdwg.mxu0
    %524 = vmatprep.subr.mxu0 %v267
    %525 = vmatpush1.msra.mxu0 %v265
    %526 = vmatprep.subr.mxu0 0.0
    %527 = vmatpush1.msra.mxu0 0.0
    %528 = vmatprep.subr.mxu0 0.0
    %529 = vmatpush1.msra.mxu0 0.0
    %530 = vmatprep.subr.mxu0 0.0
    %531 = vmatpush1.msra.mxu0 0.0
    %532 = vmatprep.subr.mxu0 0.0
    %533 = vmatpush1.msra.mxu0 0.0
    %534 = vmatprep.subr.mxu0 0.0
    %535 = vmatpush1.msra.mxu0 0.0
    %536 = vmatprep.subr.mxu0 0.0
    %537 = vmatpush1.msra.mxu0 0.0
    %538 = vmatprep.subr.mxu0 0.0
    %539 = vmatpush1.msra.mxu0 0.0
    %540 = vmatprep.subr.mxu0 0.0
    %541 = vmatpush1.msra.mxu0 0.0
    %542 = vmatprep.subr.mxu0 0.0
    %543 = vmatpush1.msra.mxu0 0.0
    %544 = vmatprep.subr.mxu0 0.0
    %545 = vmatpush1.msra.mxu0 0.0
    %546 = vmatprep.subr.mxu0 0.0
    %547 = vmatpush1.msra.mxu0 0.0
    %548 = vmatprep.subr.mxu0 0.0
    %549 = vmatpush1.msra.mxu0 0.0
    %550 = vmatprep.subr.mxu0 0.0
    %551 = vmatpush1.msra.mxu0 0.0
    %552 = vmatprep.subr.mxu0 0.0
    %553 = vmatpush1.msra.mxu0 0.0
    %554 = vmatprep.subr.mxu0 0.0
    %555 = vmatpush1.msra.mxu0 0.0
    %556 = vmatprep.subr.mxu0 0.0
    %557 = vmatpush1.msra.mxu0 0.0
    %558 = vmatprep.subr.mxu0 0.0
    %559 = vmatpush1.msra.mxu0 0.0
    %560 = vmatprep.subr.mxu0 0.0
    %561 = vmatpush1.msra.mxu0 0.0
    %562 = vmatprep.subr.mxu0 0.0
    %563 = vmatpush1.msra.mxu0 0.0
    %564 = vmatprep.subr.mxu0 0.0
    %565 = vmatpush1.msra.mxu0 0.0
    %566 = vmatprep.subr.mxu0 0.0
    %567 = vmatpush1.msra.mxu0 0.0
    %568 = vmatprep.subr.mxu0 0.0
    %569 = vmatpush1.msra.mxu0 0.0
    %570 = vmatprep.subr.mxu0 0.0
    %571 = vmatpush1.msra.mxu0 0.0
    %572 = vmatprep.subr.mxu0 0.0
    %573 = vmatpush1.msra.mxu0 0.0
    %574 = vmatprep.subr.mxu0 0.0
    %575 = vmatpush1.msra.mxu0 0.0
    %576 = vmatprep.subr.mxu0 0.0
    %577 = vmatpush1.msra.mxu0 0.0
    %578 = vmatprep.subr.mxu0 0.0
    %579 = vmatpush1.msra.mxu0 0.0
    %580 = vmatprep.subr.mxu0 0.0
    %581 = vmatpush1.msra.mxu0 0.0
    %582 = vmatprep.subr.mxu0 0.0
    %583 = vmatpush1.msra.mxu0 0.0
    %584 = vmatprep.subr.mxu0 0.0
    %585 = vmatpush1.msra.mxu0 0.0
    %586 = vmatprep.subr.mxu0 0.0
    %587 = vmatpush1.msra.mxu0 0.0
    %588 = vmatprep.mubr.f32.mxu0 0.0
    %589 = vmatmul.mubr.f32.gmra.mrb[0].mxu0 %v250
    %v590 = vpop.f32.mrb[0].mxu0
    %v591 = vadd.f32 %v101, %v590
    %v592 = vpop.f32.mrb[0].mxu0
    %v593 = vadd.f32 %v105, %v592
    %594 = vdwg.mxu0
    %595 = vmatprep.subr.mxu0 %v271
    %596 = vmatpush1.msra.mxu0 %v269
    %597 = vmatprep.subr.mxu0 0.0
    %598 = vmatpush1.msra.mxu0 0.0
    %599 = vmatprep.subr.mxu0 0.0
    %600 = vmatpush1.msra.mxu0 0.0
    %601 = vmatprep.subr.mxu0 0.0
    %602 = vmatpush1.msra.mxu0 0.0
    %603 = vmatprep.subr.mxu0 0.0
    %604 = vmatpush1.msra.mxu0 0.0
    %605 = vmatprep.subr.mxu0 0.0
    %606 = vmatpush1.msra.mxu0 0.0
    %607 = vmatprep.subr.mxu0 0.0
    %608 = vmatpush1.msra.mxu0 0.0
    %609 = vmatprep.subr.mxu0 0.0
    %610 = vmatpush1.msra.mxu0 0.0
    %611 = vmatprep.subr.mxu0 0.0
    %612 = vmatpush1.msra.mxu0 0.0
    %613 = vmatprep.subr.mxu0 0.0
    %614 = vmatpush1.msra.mxu0 0.0
    %615 = vmatprep.subr.mxu0 0.0
    %616 = vmatpush1.msra.mxu0 0.0
    %617 = vmatprep.subr.mxu0 0.0
    %618 = vmatpush1.msra.mxu0 0.0
    %619 = vmatprep.subr.mxu0 0.0
    %620 = vmatpush1.msra.mxu0 0.0
    %621 = vmatprep.subr.mxu0 0.0
    %622 = vmatpush1.msra.mxu0 0.0
    %623 = vmatprep.subr.mxu0 0.0
    %624 = vmatpush1.msra.mxu0 0.0
    %625 = vmatprep.subr.mxu0 0.0
    %626 = vmatpush1.msra.mxu0 0.0
    %627 = vmatprep.subr.mxu0 0.0
    %628 = vmatpush1.msra.mxu0 0.0
    %629 = vmatprep.subr.mxu0 0.0
    %630 = vmatpush1.msra.mxu0 0.0
    %631 = vmatprep.subr.mxu0 0.0
    %632 = vmatpush1.msra.mxu0 0.0
    %633 = vmatprep.subr.mxu0 0.0
    %634 = vmatpush1.msra.mxu0 0.0
    %635 = vmatprep.subr.mxu0 0.0
    %636 = vmatpush1.msra.mxu0 0.0
    %637 = vmatprep.subr.mxu0 0.0
    %638 = vmatpush1.msra.mxu0 0.0
    %639 = vmatprep.subr.mxu0 0.0
    %640 = vmatpush1.msra.mxu0 0.0
    %641 = vmatprep.subr.mxu0 0.0
    %642 = vmatpush1.msra.mxu0 0.0
    %643 = vmatprep.subr.mxu0 0.0
    %644 = vmatpush1.msra.mxu0 0.0
    %645 = vmatprep.subr.mxu0 0.0
    %646 = vmatpush1.msra.mxu0 0.0
    %647 = vmatprep.subr.mxu0 0.0
    %648 = vmatpush1.msra.mxu0 0.0
    %649 = vmatprep.subr.mxu0 0.0
    %650 = vmatpush1.msra.mxu0 0.0
    %651 = vmatprep.subr.mxu0 0.0
    %652 = vmatpush1.msra.mxu0 0.0
    %653 = vmatprep.subr.mxu0 0.0
    %654 = vmatpush1.msra.mxu0 0.0
    %655 = vmatprep.subr.mxu0 0.0
    %656 = vmatpush1.msra.mxu0 0.0
    %657 = vmatprep.subr.mxu0 0.0
    %658 = vmatpush1.msra.mxu0 0.0
    %659 = vmatprep.mubr.f32.mxu0 0.0
    %660 = vmatmul.mubr.f32.gmra.mrb[0].mxu0 %v250
    %v661 = vpop.f32.mrb[0].mxu0
    %v662 = vadd.f32 %v109, %v661
    %v663 = vpop.f32.mrb[0].mxu0
    %v664 = vadd.f32 %v113, %v663
    %665 = vdwg.mxu0
    %666 = vmatprep.subr.mxu0 %v275
    %667 = vmatpush1.msra.mxu0 %v273
    %668 = vmatprep.subr.mxu0 0.0
    %669 = vmatpush1.msra.mxu0 0.0
    %670 = vmatprep.subr.mxu0 0.0
    %671 = vmatpush1.msra.mxu0 0.0
    %672 = vmatprep.subr.mxu0 0.0
    %673 = vmatpush1.msra.mxu0 0.0
    %674 = vmatprep.subr.mxu0 0.0
    %675 = vmatpush1.msra.mxu0 0.0
    %676 = vmatprep.subr.mxu0 0.0
    %677 = vmatpush1.msra.mxu0 0.0
    %678 = vmatprep.subr.mxu0 0.0
    %679 = vmatpush1.msra.mxu0 0.0
    %680 = vmatprep.subr.mxu0 0.0
    %681 = vmatpush1.msra.mxu0 0.0
    %682 = vmatprep.subr.mxu0 0.0
    %683 = vmatpush1.msra.mxu0 0.0
    %684 = vmatprep.subr.mxu0 0.0
    %685 = vmatpush1.msra.mxu0 0.0
    %686 = vmatprep.subr.mxu0 0.0
    %687 = vmatpush1.msra.mxu0 0.0
    %688 = vmatprep.subr.mxu0 0.0
    %689 = vmatpush1.msra.mxu0 0.0
    %690 = vmatprep.subr.mxu0 0.0
    %691 = vmatpush1.msra.mxu0 0.0
    %692 = vmatprep.subr.mxu0 0.0
    %693 = vmatpush1.msra.mxu0 0.0
    %694 = vmatprep.subr.mxu0 0.0
    %695 = vmatpush1.msra.mxu0 0.0
    %696 = vmatprep.subr.mxu0 0.0
    %697 = vmatpush1.msra.mxu0 0.0
    %698 = vmatprep.subr.mxu0 0.0
    %699 = vmatpush1.msra.mxu0 0.0
    %700 = vmatprep.subr.mxu0 0.0
    %701 = vmatpush1.msra.mxu0 0.0
    %702 = vmatprep.subr.mxu0 0.0
    %703 = vmatpush1.msra.mxu0 0.0
    %704 = vmatprep.subr.mxu0 0.0
    %705 = vmatpush1.msra.mxu0 0.0
    %706 = vmatprep.subr.mxu0 0.0
    %707 = vmatpush1.msra.mxu0 0.0
    %708 = vmatprep.subr.mxu0 0.0
    %709 = vmatpush1.msra.mxu0 0.0
    %710 = vmatprep.subr.mxu0 0.0
    %711 = vmatpush1.msra.mxu0 0.0
    %712 = vmatprep.subr.mxu0 0.0
    %713 = vmatpush1.msra.mxu0 0.0
    %714 = vmatprep.subr.mxu0 0.0
    %715 = vmatpush1.msra.mxu0 0.0
    %716 = vmatprep.subr.mxu0 0.0
    %717 = vmatpush1.msra.mxu0 0.0
    %718 = vmatprep.subr.mxu0 0.0
    %719 = vmatpush1.msra.mxu0 0.0
    %720 = vmatprep.subr.mxu0 0.0
    %721 = vmatpush1.msra.mxu0 0.0
    %722 = vmatprep.subr.mxu0 0.0
    %723 = vmatpush1.msra.mxu0 0.0
    %724 = vmatprep.subr.mxu0 0.0
    %725 = vmatpush1.msra.mxu0 0.0
    %726 = vmatprep.subr.mxu0 0.0
    %727 = vmatpush1.msra.mxu0 0.0
    %728 = vmatprep.subr.mxu0 0.0
    %729 = vmatpush1.msra.mxu0 0.0
    %730 = vmatprep.mubr.f32.mxu0 0.0
    %731 = vmatmul.mubr.f32.gmra.mrb[0].mxu0 %v250
    %v732 = vpop.f32.mrb[0].mxu0
    %v733 = vadd.f32 %v117, %v732
    %v734 = vpop.f32.mrb[0].mxu0
    %v735 = vadd.f32 %v121, %v734
    %736 = vdwg.mxu0
    %737 = vmatprep.subr.mxu0 %v279
    %738 = vmatpush1.msra.mxu0 %v277
    %739 = vmatprep.subr.mxu0 0.0
    %740 = vmatpush1.msra.mxu0 0.0
    %741 = vmatprep.subr.mxu0 0.0
    %742 = vmatpush1.msra.mxu0 0.0
    %743 = vmatprep.subr.mxu0 0.0
    %744 = vmatpush1.msra.mxu0 0.0
    %745 = vmatprep.subr.mxu0 0.0
    %746 = vmatpush1.msra.mxu0 0.0
    %747 = vmatprep.subr.mxu0 0.0
    %748 = vmatpush1.msra.mxu0 0.0
    %749 = vmatprep.subr.mxu0 0.0
    %750 = vmatpush1.msra.mxu0 0.0
    %751 = vmatprep.subr.mxu0 0.0
    %752 = vmatpush1.msra.mxu0 0.0
    %753 = vmatprep.subr.mxu0 0.0
    %754 = vmatpush1.msra.mxu0 0.0
    %755 = vmatprep.subr.mxu0 0.0
    %756 = vmatpush1.msra.mxu0 0.0
    %757 = vmatprep.subr.mxu0 0.0
    %758 = vmatpush1.msra.mxu0 0.0
    %759 = vmatprep.subr.mxu0 0.0
    %760 = vmatpush1.msra.mxu0 0.0
    %761 = vmatprep.subr.mxu0 0.0
    %762 = vmatpush1.msra.mxu0 0.0
    %763 = vmatprep.subr.mxu0 0.0
    %764 = vmatpush1.msra.mxu0 0.0
    %765 = vmatprep.subr.mxu0 0.0
    %766 = vmatpush1.msra.mxu0 0.0
    %767 = vmatprep.subr.mxu0 0.0
    %768 = vmatpush1.msra.mxu0 0.0
    %769 = vmatprep.subr.mxu0 0.0
    %770 = vmatpush1.msra.mxu0 0.0
    %771 = vmatprep.subr.mxu0 0.0
    %772 = vmatpush1.msra.mxu0 0.0
    %773 = vmatprep.subr.mxu0 0.0
    %774 = vmatpush1.msra.mxu0 0.0
    %775 = vmatprep.subr.mxu0 0.0
    %776 = vmatpush1.msra.mxu0 0.0
    %777 = vmatprep.subr.mxu0 0.0
    %778 = vmatpush1.msra.mxu0 0.0
    %779 = vmatprep.subr.mxu0 0.0
    %780 = vmatpush1.msra.mxu0 0.0
    %781 = vmatprep.subr.mxu0 0.0
    %782 = vmatpush1.msra.mxu0 0.0
    %783 = vmatprep.subr.mxu0 0.0
    %784 = vmatpush1.msra.mxu0 0.0
    %785 = vmatprep.subr.mxu0 0.0
    %786 = vmatpush1.msra.mxu0 0.0
    %787 = vmatprep.subr.mxu0 0.0
    %788 = vmatpush1.msra.mxu0 0.0
    %789 = vmatprep.subr.mxu0 0.0
    %790 = vmatpush1.msra.mxu0 0.0
    %791 = vmatprep.subr.mxu0 0.0
    %792 = vmatpush1.msra.mxu0 0.0
    %793 = vmatprep.subr.mxu0 0.0
    %794 = vmatpush1.msra.mxu0 0.0
    %795 = vmatprep.subr.mxu0 0.0
    %796 = vmatpush1.msra.mxu0 0.0
    %797 = vmatprep.subr.mxu0 0.0
    %798 = vmatpush1.msra.mxu0 0.0
    %799 = vmatprep.subr.mxu0 0.0
    %800 = vmatpush1.msra.mxu0 0.0
    %801 = vmatprep.mubr.f32.mxu0 0.0
    %802 = vmatmul.mubr.f32.gmra.mrb[0].mxu0 %v250
    %v803 = vpop.f32.mrb[0].mxu0
    %v804 = vadd.f32 %v125, %v803
    %v805 = vpop.f32.mrb[0].mxu0
    %v806 = vadd.f32 %v129, %v805
    %807 = vdwg.mxu0
    %808 = vmatprep.subr.mxu0 %v283
    %809 = vmatpush1.msra.mxu0 %v281
    %810 = vmatprep.subr.mxu0 0.0
    %811 = vmatpush1.msra.mxu0 0.0
    %812 = vmatprep.subr.mxu0 0.0
    %813 = vmatpush1.msra.mxu0 0.0
    %814 = vmatprep.subr.mxu0 0.0
    %815 = vmatpush1.msra.mxu0 0.0
    %816 = vmatprep.subr.mxu0 0.0
    %817 = vmatpush1.msra.mxu0 0.0
    %818 = vmatprep.subr.mxu0 0.0
    %819 = vmatpush1.msra.mxu0 0.0
    %820 = vmatprep.subr.mxu0 0.0
    %821 = vmatpush1.msra.mxu0 0.0
    %822 = vmatprep.subr.mxu0 0.0
    %823 = vmatpush1.msra.mxu0 0.0
    %824 = vmatprep.subr.mxu0 0.0
    %825 = vmatpush1.msra.mxu0 0.0
    %826 = vmatprep.subr.mxu0 0.0
    %827 = vmatpush1.msra.mxu0 0.0
    %828 = vmatprep.subr.mxu0 0.0
    %829 = vmatpush1.msra.mxu0 0.0
    %830 = vmatprep.subr.mxu0 0.0
    %831 = vmatpush1.msra.mxu0 0.0
    %832 = vmatprep.subr.mxu0 0.0
    %833 = vmatpush1.msra.mxu0 0.0
    %834 = vmatprep.subr.mxu0 0.0
    %835 = vmatpush1.msra.mxu0 0.0
    %836 = vmatprep.subr.mxu0 0.0
    %837 = vmatpush1.msra.mxu0 0.0
    %838 = vmatprep.subr.mxu0 0.0
    %839 = vmatpush1.msra.mxu0 0.0
    %840 = vmatprep.subr.mxu0 0.0
    %841 = vmatpush1.msra.mxu0 0.0
    %842 = vmatprep.subr.mxu0 0.0
    %843 = vmatpush1.msra.mxu0 0.0
    %844 = vmatprep.subr.mxu0 0.0
    %845 = vmatpush1.msra.mxu0 0.0
    %846 = vmatprep.subr.mxu0 0.0
    %847 = vmatpush1.msra.mxu0 0.0
    %848 = vmatprep.subr.mxu0 0.0
    %849 = vmatpush1.msra.mxu0 0.0
    %850 = vmatprep.subr.mxu0 0.0
    %851 = vmatpush1.msra.mxu0 0.0
    %852 = vmatprep.subr.mxu0 0.0
    %853 = vmatpush1.msra.mxu0 0.0
    %854 = vmatprep.subr.mxu0 0.0
    %855 = vmatpush1.msra.mxu0 0.0
    %856 = vmatprep.subr.mxu0 0.0
    %857 = vmatpush1.msra.mxu0 0.0
    %858 = vmatprep.subr.mxu0 0.0
    %859 = vmatpush1.msra.mxu0 0.0
    %860 = vmatprep.subr.mxu0 0.0
    %861 = vmatpush1.msra.mxu0 0.0
    %862 = vmatprep.subr.mxu0 0.0
    %863 = vmatpush1.msra.mxu0 0.0
    %864 = vmatprep.subr.mxu0 0.0
    %865 = vmatpush1.msra.mxu0 0.0
    %866 = vmatprep.subr.mxu0 0.0
    %867 = vmatpush1.msra.mxu0 0.0
    %868 = vmatprep.subr.mxu0 0.0
    %869 = vmatpush1.msra.mxu0 0.0
    %870 = vmatprep.subr.mxu0 0.0
    %871 = vmatpush1.msra.mxu0 0.0
    %872 = vmatprep.mubr.f32.mxu0 0.0
    %873 = vmatmul.mubr.f32.gmra.mrb[0].mxu0 %v250
    %v874 = vpop.f32.mrb[0].mxu0
    %v875 = vadd.f32 %v133, %v874
    %v876 = vpop.f32.mrb[0].mxu0
    %v877 = vadd.f32 %v137, %v876
    %878 = vdwg.mxu0
    %879 = vmatprep.subr.mxu0 %v287
    %880 = vmatpush1.msra.mxu0 %v285
    %881 = vmatprep.subr.mxu0 0.0
    %882 = vmatpush1.msra.mxu0 0.0
    %883 = vmatprep.subr.mxu0 0.0
    %884 = vmatpush1.msra.mxu0 0.0
    %885 = vmatprep.subr.mxu0 0.0
    %886 = vmatpush1.msra.mxu0 0.0
    %887 = vmatprep.subr.mxu0 0.0
    %888 = vmatpush1.msra.mxu0 0.0
    %889 = vmatprep.subr.mxu0 0.0
    %890 = vmatpush1.msra.mxu0 0.0
    %891 = vmatprep.subr.mxu0 0.0
    %892 = vmatpush1.msra.mxu0 0.0
    %893 = vmatprep.subr.mxu0 0.0
    %894 = vmatpush1.msra.mxu0 0.0
    %895 = vmatprep.subr.mxu0 0.0
    %896 = vmatpush1.msra.mxu0 0.0
    %897 = vmatprep.subr.mxu0 0.0
    %898 = vmatpush1.msra.mxu0 0.0
    %899 = vmatprep.subr.mxu0 0.0
    %900 = vmatpush1.msra.mxu0 0.0
    %901 = vmatprep.subr.mxu0 0.0
    %902 = vmatpush1.msra.mxu0 0.0
    %903 = vmatprep.subr.mxu0 0.0
    %904 = vmatpush1.msra.mxu0 0.0
    %905 = vmatprep.subr.mxu0 0.0
    %906 = vmatpush1.msra.mxu0 0.0
    %907 = vmatprep.subr.mxu0 0.0
    %908 = vmatpush1.msra.mxu0 0.0
    %909 = vmatprep.subr.mxu0 0.0
    %910 = vmatpush1.msra.mxu0 0.0
    %911 = vmatprep.subr.mxu0 0.0
    %912 = vmatpush1.msra.mxu0 0.0
    %913 = vmatprep.subr.mxu0 0.0
    %914 = vmatpush1.msra.mxu0 0.0
    %915 = vmatprep.subr.mxu0 0.0
    %916 = vmatpush1.msra.mxu0 0.0
    %917 = vmatprep.subr.mxu0 0.0
    %918 = vmatpush1.msra.mxu0 0.0
    %919 = vmatprep.subr.mxu0 0.0
    %920 = vmatpush1.msra.mxu0 0.0
    %921 = vmatprep.subr.mxu0 0.0
    %922 = vmatpush1.msra.mxu0 0.0
    %923 = vmatprep.subr.mxu0 0.0
    %924 = vmatpush1.msra.mxu0 0.0
    %925 = vmatprep.subr.mxu0 0.0
    %926 = vmatpush1.msra.mxu0 0.0
    %927 = vmatprep.subr.mxu0 0.0
    %928 = vmatpush1.msra.mxu0 0.0
    %929 = vmatprep.subr.mxu0 0.0
    %930 = vmatpush1.msra.mxu0 0.0
    %931 = vmatprep.subr.mxu0 0.0
    %932 = vmatpush1.msra.mxu0 0.0
    %933 = vmatprep.subr.mxu0 0.0
    %934 = vmatpush1.msra.mxu0 0.0
    %935 = vmatprep.subr.mxu0 0.0
    %936 = vmatpush1.msra.mxu0 0.0
    %937 = vmatprep.subr.mxu0 0.0
    %938 = vmatpush1.msra.mxu0 0.0
    %939 = vmatprep.subr.mxu0 0.0
    %940 = vmatpush1.msra.mxu0 0.0
    %941 = vmatprep.subr.mxu0 0.0
    %942 = vmatpush1.msra.mxu0 0.0
    %943 = vmatprep.mubr.f32.mxu0 0.0
    %944 = vmatmul.mubr.f32.gmra.mrb[0].mxu0 %v250
    %v945 = vpop.f32.mrb[0].mxu0
    %v946 = vadd.f32 %v141, %v945
    %v947 = vpop.f32.mrb[0].mxu0
    %v948 = vadd.f32 %v145, %v947
    %949 = vdwg.mxu0
    %950 = vmatprep.subr.mxu0 %v291
    %951 = vmatpush1.msra.mxu0 %v289
    %952 = vmatprep.subr.mxu0 0.0
    %953 = vmatpush1.msra.mxu0 0.0
    %954 = vmatprep.subr.mxu0 0.0
    %955 = vmatpush1.msra.mxu0 0.0
    %956 = vmatprep.subr.mxu0 0.0
    %957 = vmatpush1.msra.mxu0 0.0
    %958 = vmatprep.subr.mxu0 0.0
    %959 = vmatpush1.msra.mxu0 0.0
    %960 = vmatprep.subr.mxu0 0.0
    %961 = vmatpush1.msra.mxu0 0.0
    %962 = vmatprep.subr.mxu0 0.0
    %963 = vmatpush1.msra.mxu0 0.0
    %964 = vmatprep.subr.mxu0 0.0
    %965 = vmatpush1.msra.mxu0 0.0
    %966 = vmatprep.subr.mxu0 0.0
    %967 = vmatpush1.msra.mxu0 0.0
    %968 = vmatprep.subr.mxu0 0.0
    %969 = vmatpush1.msra.mxu0 0.0
    %970 = vmatprep.subr.mxu0 0.0
    %971 = vmatpush1.msra.mxu0 0.0
    %972 = vmatprep.subr.mxu0 0.0
    %973 = vmatpush1.msra.mxu0 0.0
    %974 = vmatprep.subr.mxu0 0.0
    %975 = vmatpush1.msra.mxu0 0.0
    %976 = vmatprep.subr.mxu0 0.0
    %977 = vmatpush1.msra.mxu0 0.0
    %978 = vmatprep.subr.mxu0 0.0
    %979 = vmatpush1.msra.mxu0 0.0
    %980 = vmatprep.subr.mxu0 0.0
    %981 = vmatpush1.msra.mxu0 0.0
    %982 = vmatprep.subr.mxu0 0.0
    %983 = vmatpush1.msra.mxu0 0.0
    %984 = vmatprep.subr.mxu0 0.0
    %985 = vmatpush1.msra.mxu0 0.0
    %986 = vmatprep.subr.mxu0 0.0
    %987 = vmatpush1.msra.mxu0 0.0
    %988 = vmatprep.subr.mxu0 0.0
    %989 = vmatpush1.msra.mxu0 0.0
    %990 = vmatprep.subr.mxu0 0.0
    %991 = vmatpush1.msra.mxu0 0.0
    %992 = vmatprep.subr.mxu0 0.0
    %993 = vmatpush1.msra.mxu0 0.0
    %994 = vmatprep.subr.mxu0 0.0
    %995 = vmatpush1.msra.mxu0 0.0
    %996 = vmatprep.subr.mxu0 0.0
    %997 = vmatpush1.msra.mxu0 0.0
    %998 = vmatprep.subr.mxu0 0.0
    %999 = vmatpush1.msra.mxu0 0.0
    %1000 = vmatprep.subr.mxu0 0.0
    %1001 = vmatpush1.msra.mxu0 0.0
    %1002 = vmatprep.subr.mxu0 0.0
    %1003 = vmatpush1.msra.mxu0 0.0
    %1004 = vmatprep.subr.mxu0 0.0
    %1005 = vmatpush1.msra.mxu0 0.0
    %1006 = vmatprep.subr.mxu0 0.0
    %1007 = vmatpush1.msra.mxu0 0.0
    %1008 = vmatprep.subr.mxu0 0.0
    %1009 = vmatpush1.msra.mxu0 0.0
    %1010 = vmatprep.subr.mxu0 0.0
    %1011 = vmatpush1.msra.mxu0 0.0
    %1012 = vmatprep.subr.mxu0 0.0
    %1013 = vmatpush1.msra.mxu0 0.0
    %1014 = vmatprep.mubr.f32.mxu0 0.0
    %1015 = vmatmul.mubr.f32.gmra.mrb[0].mxu0 %v250
    %v1016 = vpop.f32.mrb[0].mxu0
    %v1017 = vadd.f32 %v149, %v1016
    %v1018 = vpop.f32.mrb[0].mxu0
    %v1019 = vadd.f32 %v153, %v1018
    %1020 = vdwg.mxu0
    %1021 = vmatprep.subr.mxu0 %v295
    %1022 = vmatpush1.msra.mxu0 %v293
    %1023 = vmatprep.subr.mxu0 0.0
    %1024 = vmatpush1.msra.mxu0 0.0
    %1025 = vmatprep.subr.mxu0 0.0
    %1026 = vmatpush1.msra.mxu0 0.0
    %1027 = vmatprep.subr.mxu0 0.0
    %1028 = vmatpush1.msra.mxu0 0.0
    %1029 = vmatprep.subr.mxu0 0.0
    %1030 = vmatpush1.msra.mxu0 0.0
    %1031 = vmatprep.subr.mxu0 0.0
    %1032 = vmatpush1.msra.mxu0 0.0
    %1033 = vmatprep.subr.mxu0 0.0
    %1034 = vmatpush1.msra.mxu0 0.0
    %1035 = vmatprep.subr.mxu0 0.0
    %1036 = vmatpush1.msra.mxu0 0.0
    %1037 = vmatprep.subr.mxu0 0.0
    %1038 = vmatpush1.msra.mxu0 0.0
    %1039 = vmatprep.subr.mxu0 0.0
    %1040 = vmatpush1.msra.mxu0 0.0
    %1041 = vmatprep.subr.mxu0 0.0
    %1042 = vmatpush1.msra.mxu0 0.0
    %1043 = vmatprep.subr.mxu0 0.0
    %1044 = vmatpush1.msra.mxu0 0.0
    %1045 = vmatprep.subr.mxu0 0.0
    %1046 = vmatpush1.msra.mxu0 0.0
    %1047 = vmatprep.subr.mxu0 0.0
    %1048 = vmatpush1.msra.mxu0 0.0
    %1049 = vmatprep.subr.mxu0 0.0
    %1050 = vmatpush1.msra.mxu0 0.0
    %1051 = vmatprep.subr.mxu0 0.0
    %1052 = vmatpush1.msra.mxu0 0.0
    %1053 = vmatprep.subr.mxu0 0.0
    %1054 = vmatpush1.msra.mxu0 0.0
    %1055 = vmatprep.subr.mxu0 0.0
    %1056 = vmatpush1.msra.mxu0 0.0
    %1057 = vmatprep.subr.mxu0 0.0
    %1058 = vmatpush1.msra.mxu0 0.0
    %1059 = vmatprep.subr.mxu0 0.0
    %1060 = vmatpush1.msra.mxu0 0.0
    %1061 = vmatprep.subr.mxu0 0.0
    %1062 = vmatpush1.msra.mxu0 0.0
    %1063 = vmatprep.subr.mxu0 0.0
    %1064 = vmatpush1.msra.mxu0 0.0
    %1065 = vmatprep.subr.mxu0 0.0
    %1066 = vmatpush1.msra.mxu0 0.0
    %1067 = vmatprep.subr.mxu0 0.0
    %1068 = vmatpush1.msra.mxu0 0.0
    %1069 = vmatprep.subr.mxu0 0.0
    %1070 = vmatpush1.msra.mxu0 0.0
    %1071 = vmatprep.subr.mxu0 0.0
    %1072 = vmatpush1.msra.mxu0 0.0
    %1073 = vmatprep.subr.mxu0 0.0
    %1074 = vmatpush1.msra.mxu0 0.0
    %1075 = vmatprep.subr.mxu0 0.0
    %1076 = vmatpush1.msra.mxu0 0.0
    %1077 = vmatprep.subr.mxu0 0.0
    %1078 = vmatpush1.msra.mxu0 0.0
    %1079 = vmatprep.subr.mxu0 0.0
    %1080 = vmatpush1.msra.mxu0 0.0
    %1081 = vmatprep.subr.mxu0 0.0
    %1082 = vmatpush1.msra.mxu0 0.0
    %1083 = vmatprep.subr.mxu0 0.0
    %1084 = vmatpush1.msra.mxu0 0.0
    %1085 = vmatprep.mubr.f32.mxu0 0.0
    %1086 = vmatmul.mubr.f32.gmra.mrb[0].mxu0 %v250
    %v1087 = vpop.f32.mrb[0].mxu0
    %v1088 = vadd.f32 %v157, %v1087
    %v1089 = vpop.f32.mrb[0].mxu0
    %v1090 = vadd.f32 %v161, %v1089
    %1091 = vdwg.mxu0
    %1092 = vmatprep.subr.mxu0 %v299
    %1093 = vmatpush1.msra.mxu0 %v297
    %1094 = vmatprep.subr.mxu0 0.0
    %1095 = vmatpush1.msra.mxu0 0.0
    %1096 = vmatprep.subr.mxu0 0.0
    %1097 = vmatpush1.msra.mxu0 0.0
    %1098 = vmatprep.subr.mxu0 0.0
    %1099 = vmatpush1.msra.mxu0 0.0
    %1100 = vmatprep.subr.mxu0 0.0
    %1101 = vmatpush1.msra.mxu0 0.0
    %1102 = vmatprep.subr.mxu0 0.0
    %1103 = vmatpush1.msra.mxu0 0.0
    %1104 = vmatprep.subr.mxu0 0.0
    %1105 = vmatpush1.msra.mxu0 0.0
    %1106 = vmatprep.subr.mxu0 0.0
    %1107 = vmatpush1.msra.mxu0 0.0
    %1108 = vmatprep.subr.mxu0 0.0
    %1109 = vmatpush1.msra.mxu0 0.0
    %1110 = vmatprep.subr.mxu0 0.0
    %1111 = vmatpush1.msra.mxu0 0.0
    %1112 = vmatprep.subr.mxu0 0.0
    %1113 = vmatpush1.msra.mxu0 0.0
    %1114 = vmatprep.subr.mxu0 0.0
    %1115 = vmatpush1.msra.mxu0 0.0
    %1116 = vmatprep.subr.mxu0 0.0
    %1117 = vmatpush1.msra.mxu0 0.0
    %1118 = vmatprep.subr.mxu0 0.0
    %1119 = vmatpush1.msra.mxu0 0.0
    %1120 = vmatprep.subr.mxu0 0.0
    %1121 = vmatpush1.msra.mxu0 0.0
    %1122 = vmatprep.subr.mxu0 0.0
    %1123 = vmatpush1.msra.mxu0 0.0
    %1124 = vmatprep.subr.mxu0 0.0
    %1125 = vmatpush1.msra.mxu0 0.0
    %1126 = vmatprep.subr.mxu0 0.0
    %1127 = vmatpush1.msra.mxu0 0.0
    %1128 = vmatprep.subr.mxu0 0.0
    %1129 = vmatpush1.msra.mxu0 0.0
    %1130 = vmatprep.subr.mxu0 0.0
    %1131 = vmatpush1.msra.mxu0 0.0
    %1132 = vmatprep.subr.mxu0 0.0
    %1133 = vmatpush1.msra.mxu0 0.0
    %1134 = vmatprep.subr.mxu0 0.0
    %1135 = vmatpush1.msra.mxu0 0.0
    %1136 = vmatprep.subr.mxu0 0.0
    %1137 = vmatpush1.msra.mxu0 0.0
    %1138 = vmatprep.subr.mxu0 0.0
    %1139 = vmatpush1.msra.mxu0 0.0
    %1140 = vmatprep.subr.mxu0 0.0
    %1141 = vmatpush1.msra.mxu0 0.0
    %1142 = vmatprep.subr.mxu0 0.0
    %1143 = vmatpush1.msra.mxu0 0.0
    %1144 = vmatprep.subr.mxu0 0.0
    %1145 = vmatpush1.msra.mxu0 0.0
    %1146 = vmatprep.subr.mxu0 0.0
    %1147 = vmatpush1.msra.mxu0 0.0
    %1148 = vmatprep.subr.mxu0 0.0
    %1149 = vmatpush1.msra.mxu0 0.0
    %1150 = vmatprep.subr.mxu0 0.0
    %1151 = vmatpush1.msra.mxu0 0.0
    %1152 = vmatprep.subr.mxu0 0.0
    %1153 = vmatpush1.msra.mxu0 0.0
    %1154 = vmatprep.subr.mxu0 0.0
    %1155 = vmatpush1.msra.mxu0 0.0
    %1156 = vmatprep.mubr.f32.mxu0 0.0
    %1157 = vmatmul.mubr.f32.gmra.mrb[0].mxu0 %v250
    %v1158 = vpop.f32.mrb[0].mxu0
    %v1159 = vadd.f32 %v165, %v1158
    %v1160 = vpop.f32.mrb[0].mxu0
    %v1161 = vadd.f32 %v169, %v1160
    %1162 = vdwg.mxu0
    %1163 = vmatprep.subr.mxu0 %v303
    %1164 = vmatpush1.msra.mxu0 %v301
    %1165 = vmatprep.subr.mxu0 0.0
    %1166 = vmatpush1.msra.mxu0 0.0
    %1167 = vmatprep.subr.mxu0 0.0
    %1168 = vmatpush1.msra.mxu0 0.0
    %1169 = vmatprep.subr.mxu0 0.0
    %1170 = vmatpush1.msra.mxu0 0.0
    %1171 = vmatprep.subr.mxu0 0.0
    %1172 = vmatpush1.msra.mxu0 0.0
    %1173 = vmatprep.subr.mxu0 0.0
    %1174 = vmatpush1.msra.mxu0 0.0
    %1175 = vmatprep.subr.mxu0 0.0
    %1176 = vmatpush1.msra.mxu0 0.0
    %1177 = vmatprep.subr.mxu0 0.0
    %1178 = vmatpush1.msra.mxu0 0.0
    %1179 = vmatprep.subr.mxu0 0.0
    %1180 = vmatpush1.msra.mxu0 0.0
    %1181 = vmatprep.subr.mxu0 0.0
    %1182 = vmatpush1.msra.mxu0 0.0
    %1183 = vmatprep.subr.mxu0 0.0
    %1184 = vmatpush1.msra.mxu0 0.0
    %1185 = vmatprep.subr.mxu0 0.0
    %1186 = vmatpush1.msra.mxu0 0.0
    %1187 = vmatprep.subr.mxu0 0.0
    %1188 = vmatpush1.msra.mxu0 0.0
    %1189 = vmatprep.subr.mxu0 0.0
    %1190 = vmatpush1.msra.mxu0 0.0
    %1191 = vmatprep.subr.mxu0 0.0
    %1192 = vmatpush1.msra.mxu0 0.0
    %1193 = vmatprep.subr.mxu0 0.0
    %1194 = vmatpush1.msra.mxu0 0.0
    %1195 = vmatprep.subr.mxu0 0.0
    %1196 = vmatpush1.msra.mxu0 0.0
    %1197 = vmatprep.subr.mxu0 0.0
    %1198 = vmatpush1.msra.mxu0 0.0
    %1199 = vmatprep.subr.mxu0 0.0
    %1200 = vmatpush1.msra.mxu0 0.0
    %1201 = vmatprep.subr.mxu0 0.0
    %1202 = vmatpush1.msra.mxu0 0.0
    %1203 = vmatprep.subr.mxu0 0.0
    %1204 = vmatpush1.msra.mxu0 0.0
    %1205 = vmatprep.subr.mxu0 0.0
    %1206 = vmatpush1.msra.mxu0 0.0
    %1207 = vmatprep.subr.mxu0 0.0
    %1208 = vmatpush1.msra.mxu0 0.0
    %1209 = vmatprep.subr.mxu0 0.0
    %1210 = vmatpush1.msra.mxu0 0.0
    %1211 = vmatprep.subr.mxu0 0.0
    %1212 = vmatpush1.msra.mxu0 0.0
    %1213 = vmatprep.subr.mxu0 0.0
    %1214 = vmatpush1.msra.mxu0 0.0
    %1215 = vmatprep.subr.mxu0 0.0
    %1216 = vmatpush1.msra.mxu0 0.0
    %1217 = vmatprep.subr.mxu0 0.0
    %1218 = vmatpush1.msra.mxu0 0.0
    %1219 = vmatprep.subr.mxu0 0.0
    %1220 = vmatpush1.msra.mxu0 0.0
    %1221 = vmatprep.subr.mxu0 0.0
    %1222 = vmatpush1.msra.mxu0 0.0
    %1223 = vmatprep.subr.mxu0 0.0
    %1224 = vmatpush1.msra.mxu0 0.0
    %1225 = vmatprep.subr.mxu0 0.0
    %1226 = vmatpush1.msra.mxu0 0.0
    %1227 = vmatprep.mubr.f32.mxu0 0.0
    %1228 = vmatmul.mubr.f32.gmra.mrb[0].mxu0 %v250
    %v1229 = vpop.f32.mrb[0].mxu0
    %v1230 = vadd.f32 %v173, %v1229
    %v1231 = vpop.f32.mrb[0].mxu0
    %v1232 = vadd.f32 %v177, %v1231
    %1233 = vdwg.mxu0
    %1234 = vmatprep.subr.mxu0 %v307
    %1235 = vmatpush1.msra.mxu0 %v305
    %1236 = vmatprep.subr.mxu0 0.0
    %1237 = vmatpush1.msra.mxu0 0.0
    %1238 = vmatprep.subr.mxu0 0.0
    %1239 = vmatpush1.msra.mxu0 0.0
    %1240 = vmatprep.subr.mxu0 0.0
    %1241 = vmatpush1.msra.mxu0 0.0
    %1242 = vmatprep.subr.mxu0 0.0
    %1243 = vmatpush1.msra.mxu0 0.0
    %1244 = vmatprep.subr.mxu0 0.0
    %1245 = vmatpush1.msra.mxu0 0.0
    %1246 = vmatprep.subr.mxu0 0.0
    %1247 = vmatpush1.msra.mxu0 0.0
    %1248 = vmatprep.subr.mxu0 0.0
    %1249 = vmatpush1.msra.mxu0 0.0
    %1250 = vmatprep.subr.mxu0 0.0
    %1251 = vmatpush1.msra.mxu0 0.0
    %1252 = vmatprep.subr.mxu0 0.0
    %1253 = vmatpush1.msra.mxu0 0.0
    %1254 = vmatprep.subr.mxu0 0.0
    %1255 = vmatpush1.msra.mxu0 0.0
    %1256 = vmatprep.subr.mxu0 0.0
    %1257 = vmatpush1.msra.mxu0 0.0
    %1258 = vmatprep.subr.mxu0 0.0
    %1259 = vmatpush1.msra.mxu0 0.0
    %1260 = vmatprep.subr.mxu0 0.0
    %1261 = vmatpush1.msra.mxu0 0.0
    %1262 = vmatprep.subr.mxu0 0.0
    %1263 = vmatpush1.msra.mxu0 0.0
    %1264 = vmatprep.subr.mxu0 0.0
    %1265 = vmatpush1.msra.mxu0 0.0
    %1266 = vmatprep.subr.mxu0 0.0
    %1267 = vmatpush1.msra.mxu0 0.0
    %1268 = vmatprep.subr.mxu0 0.0
    %1269 = vmatpush1.msra.mxu0 0.0
    %1270 = vmatprep.subr.mxu0 0.0
    %1271 = vmatpush1.msra.mxu0 0.0
    %1272 = vmatprep.subr.mxu0 0.0
    %1273 = vmatpush1.msra.mxu0 0.0
    %1274 = vmatprep.subr.mxu0 0.0
    %1275 = vmatpush1.msra.mxu0 0.0
    %1276 = vmatprep.subr.mxu0 0.0
    %1277 = vmatpush1.msra.mxu0 0.0
    %1278 = vmatprep.subr.mxu0 0.0
    %1279 = vmatpush1.msra.mxu0 0.0
    %1280 = vmatprep.subr.mxu0 0.0
    %1281 = vmatpush1.msra.mxu0 0.0
    %1282 = vmatprep.subr.mxu0 0.0
    %1283 = vmatpush1.msra.mxu0 0.0
    %1284 = vmatprep.subr.mxu0 0.0
    %1285 = vmatpush1.msra.mxu0 0.0
    %1286 = vmatprep.subr.mxu0 0.0
    %1287 = vmatpush1.msra.mxu0 0.0
    %1288 = vmatprep.subr.mxu0 0.0
    %1289 = vmatpush1.msra.mxu0 0.0
    %1290 = vmatprep.subr.mxu0 0.0
    %1291 = vmatpush1.msra.mxu0 0.0
    %1292 = vmatprep.subr.mxu0 0.0
    %1293 = vmatpush1.msra.mxu0 0.0
    %1294 = vmatprep.subr.mxu0 0.0
    %1295 = vmatpush1.msra.mxu0 0.0
    %1296 = vmatprep.subr.mxu0 0.0
    %1297 = vmatpush1.msra.mxu0 0.0
    %1298 = vmatprep.mubr.f32.mxu0 0.0
    %1299 = vmatmul.mubr.f32.gmra.mrb[0].mxu0 %v250
    %v1300 = vpop.f32.mrb[0].mxu0
    %v1301 = vadd.f32 %v181, %v1300
    %v1302 = vpop.f32.mrb[0].mxu0
    %v1303 = vadd.f32 %v185, %v1302
    %1304 = vdwg.mxu0
    %1305 = vmatprep.subr.mxu0 0.0
    %1306 = vmatpush1.msra.mxu0 %v309
    %1307 = vmatprep.subr.mxu0 0.0
    %1308 = vmatpush1.msra.mxu0 0.0
    %1309 = vmatprep.subr.mxu0 0.0
    %1310 = vmatpush1.msra.mxu0 0.0
    %1311 = vmatprep.subr.mxu0 0.0
    %1312 = vmatpush1.msra.mxu0 0.0
    %1313 = vmatprep.subr.mxu0 0.0
    %1314 = vmatpush1.msra.mxu0 0.0
    %1315 = vmatprep.subr.mxu0 0.0
    %1316 = vmatpush1.msra.mxu0 0.0
    %1317 = vmatprep.subr.mxu0 0.0
    %1318 = vmatpush1.msra.mxu0 0.0
    %1319 = vmatprep.subr.mxu0 0.0
    %1320 = vmatpush1.msra.mxu0 0.0
    %1321 = vmatprep.subr.mxu0 0.0
    %1322 = vmatpush1.msra.mxu0 0.0
    %1323 = vmatprep.subr.mxu0 0.0
    %1324 = vmatpush1.msra.mxu0 0.0
    %1325 = vmatprep.subr.mxu0 0.0
    %1326 = vmatpush1.msra.mxu0 0.0
    %1327 = vmatprep.subr.mxu0 0.0
    %1328 = vmatpush1.msra.mxu0 0.0
    %1329 = vmatprep.subr.mxu0 0.0
    %1330 = vmatpush1.msra.mxu0 0.0
    %1331 = vmatprep.subr.mxu0 0.0
    %1332 = vmatpush1.msra.mxu0 0.0
    %1333 = vmatprep.subr.mxu0 0.0
    %1334 = vmatpush1.msra.mxu0 0.0
    %1335 = vmatprep.subr.mxu0 0.0
    %1336 = vmatpush1.msra.mxu0 0.0
    %1337 = vmatprep.subr.mxu0 0.0
    %1338 = vmatpush1.msra.mxu0 0.0
    %1339 = vmatprep.subr.mxu0 0.0
    %1340 = vmatpush1.msra.mxu0 0.0
    %1341 = vmatprep.subr.mxu0 0.0
    %1342 = vmatpush1.msra.mxu0 0.0
    %1343 = vmatprep.subr.mxu0 0.0
    %1344 = vmatpush1.msra.mxu0 0.0
    %1345 = vmatprep.subr.mxu0 0.0
    %1346 = vmatpush1.msra.mxu0 0.0
    %1347 = vmatprep.subr.mxu0 0.0
    %1348 = vmatpush1.msra.mxu0 0.0
    %1349 = vmatprep.subr.mxu0 0.0
    %1350 = vmatpush1.msra.mxu0 0.0
    %1351 = vmatprep.subr.mxu0 0.0
    %1352 = vmatpush1.msra.mxu0 0.0
    %1353 = vmatprep.subr.mxu0 0.0
    %1354 = vmatpush1.msra.mxu0 0.0
    %1355 = vmatprep.subr.mxu0 0.0
    %1356 = vmatpush1.msra.mxu0 0.0
    %1357 = vmatprep.subr.mxu0 0.0
    %1358 = vmatpush1.msra.mxu0 0.0
    %1359 = vmatprep.subr.mxu0 0.0
    %1360 = vmatpush1.msra.mxu0 0.0
    %1361 = vmatprep.subr.mxu0 0.0
    %1362 = vmatpush1.msra.mxu0 0.0
    %1363 = vmatprep.subr.mxu0 0.0
    %1364 = vmatpush1.msra.mxu0 0.0
    %1365 = vmatprep.subr.mxu0 0.0
    %1366 = vmatpush1.msra.mxu0 0.0
    %1367 = vmatprep.subr.mxu0 0.0
    %1368 = vmatpush1.msra.mxu0 0.0
    %1369 = vmatprep.mubr.f32.mxu0 0.0
    %1370 = vmatmul.mubr.f32.gmra.mrb[0].mxu0 %v250
    %v1371 = vpop.f32.mrb[0].mxu0
    %v1372 = vadd.f32 %v189, %v1371
    %v1373 = vpop.f32.mrb[0].mxu0
    %1374 = vdwg.mxu0
    %v1403 = vcombine.low %v378, %v380
    %v1404 = vcombine.low %v449, %v451
    %v1405 = vcombine.low %v520, %v522
    %v1406 = vcombine.low %v591, %v593
    %v1407 = vcombine.low %v662, %v664
    %v1408 = vcombine.low %v733, %v735
    %v1409 = vcombine.low %v804, %v806
    %v1410 = vcombine.low %v875, %v877
    %v1411 = vcombine.low %v946, %v948
    %v1412 = vcombine.low %v1017, %v1019
    %v1413 = vcombine.low %v1088, %v1090
    %v1414 = vcombine.low %v1159, %v1161
    %v1415 = vcombine.low %v1230, %v1232
    %v1416 = vcombine.low %v1301, %v1303
    %1431 = vst [vmem:[#allocation8] sm:$0xff] %v1403
    %1432 = vst [vmem:[#allocation8 + $0x8] sm:$0xff] %v1404
    %1433 = vst [vmem:[#allocation8 + $0x10] sm:$0xff] %v1405
    %1434 = vst [vmem:[#allocation8 + $0x18] sm:$0xff] %v1406
    %1435 = vst [vmem:[#allocation8 + $0x20] sm:$0xff] %v1407
    %1436 = vst [vmem:[#allocation8 + $0x28] sm:$0xff] %v1408
    %1437 = vst [vmem:[#allocation8 + $0x30] sm:$0xff] %v1409
    %1438 = vst [vmem:[#allocation8 + $0x38] sm:$0xff] %v1410
    %1439 = vst [vmem:[#allocation8 + $0x40] sm:$0xff] %v1411
    %1440 = vst [vmem:[#allocation8 + $0x48] sm:$0xff] %v1412
    %1441 = vst [vmem:[#allocation8 + $0x50] sm:$0xff] %v1413
    %1442 = vst [vmem:[#allocation8 + $0x58] sm:$0xff] %v1414
    %1443 = vst [vmem:[#allocation8 + $0x60] sm:$0xff] %v1415
    %1444 = vst [vmem:[#allocation8 + $0x68] sm:$0xff] %v1416
    %vm1445 = vcmask 125952
    %1446 = vst.msk [vmem:[#allocation8 + $0x70] sm:$0xf] %vm1445, %v1372
    // Predicated region
    $region26: #{tpu_custom_call.1} parent=1 // pred_check
      _
    $region27: #{tpu_custom_call.1} parent=1 // pred_check_branch
      %1448 = sbr.rel (0) target = $region29
    $region28: #{tpu_custom_call.1} parent=1 // pred_region
      %s1450 = ssub.s32 1856, 1856
      %1451 = vsyncadd [#allocation4], %s1450
      %s1453 = sshll.u32 [#allocation8], 4
      %s1454 = int_to_ptr.vmem [resolvable:$true] %s1453
      %1456 = dma.vmem_to_hbm [thread:$0]  %s1454, 1856, %s3, [#allocation4]
    $region29: #{tpu_custom_call.1} parent=1 // pred_fallthru
      _
    // Predicated region
    $region30: #{tpu_custom_call.1} parent=1 // pred_check
      _
    $region31: #{tpu_custom_call.1} parent=1 // pred_check_branch
      %1458 = sbr.rel (0) target = $region33
    $region32: #{tpu_custom_call.1} parent=1 // pred_region
      %1459 = dma.done [#allocation4], 1856
    $region33: #{tpu_custom_call.1} parent=1 // pred_fallthru
      _
    %1460 = vsyncpa [#allocation3], 1
    %1461 = vsyncpa [#allocation6], 1
    %1462 = vsyncpa [#allocation4], 1

</llo_original>
